<compile_context>
chip_gen: v5e
topology: v5e:2x2
jax: 0.10.0
libtpu: 0.0.40
codegen_flags: <defaults>
</compile_context>

<pallas_src>
import jax
import jax.numpy as jnp
from jax import lax
from jax.experimental import pallas as pl
from jax.experimental.pallas import tpu as pltpu


def _round_up(x, m):
    return ((x + m - 1) // m) * m


def _adapter_kernel(x_ref, w1_ref, s_ref, t_ref, w2_ref, b2_ref, o_ref):
    # x_ref : [TB, Dp]   activation tile (streamed over the batch grid axis)
    # w1_ref: [Hp, Dp]   first linear weight, PyTorch [out, in] layout (resident)
    # s_ref : [1, Hp]    folded BN scale                                (resident)
    # t_ref : [1, Hp]    folded BN shift (includes b1)                  (resident)
    # w2_ref: [Dp, Hp]   second linear weight, PyTorch [out, in] layout (resident)
    # b2_ref: [1, Dp]    second linear bias                             (resident)
    # o_ref : [TB, Dp]   output tile
    contract_last = (((1,), (1,)), ((), ()))  # contract dim 1 of both operands  (x @ W.T)

    h = lax.dot_general(x_ref[...], w1_ref[...], contract_last,
                        preferred_element_type=jnp.float32)
    h = jnp.maximum(h * s_ref[...] + t_ref[...], 0.0)          # BN(eval) + ReLU, full-vreg VPU
    y = lax.dot_general(h, w2_ref[...], contract_last,
                        preferred_element_type=jnp.float32)
    o_ref[...] = (y + b2_ref[...]).astype(o_ref.dtype)


def adapter_forward(features, w1, b1, gamma, beta, running_mean, running_var,
                    w2, b2, eps=1e-5):
    """features: [B, D] f32.
    w1: [H, D], b1: [H]            (first nn.Linear, PyTorch layout)
    gamma, beta, running_mean, running_var: [H]   (BatchNorm1d, eval mode)
    w2: [D, H], b2: [D]            (second nn.Linear, PyTorch layout)
    """
    B, D = features.shape
    H = w1.shape[0]
    assert w1.shape == (H, D) and w2.shape == (D, H)
    assert w2.shape[0] == D and b2.shape == (D,)

    # --- lane-dense / MXU-friendly padding -------------------------------------------------
    f32 = 4
    Dp = _round_up(D, 128)
    Hp = _round_up(H, 128)

    # Resident VMEM (weights + folded BN params + bias), independent of the batch tile.
    resident_bytes = f32 * (2 * Hp * Dp + 2 * Hp + 2 * Dp)

    # Pick the largest sublane-aligned batch tile (<= 512 rows) whose double-buffered streamed
    # tiles + f32 intermediate fit in a ~40 MiB VMEM budget (safe on v7x's 64 MiB physical VMEM).
    vmem_budget = 40 << 20
    TB = min(512, _round_up(B, 8))
    while TB > 8:
        stream_bytes = 2 * f32 * TB * Dp * 2          # double-buffered x tile + out tile
        scratch_bytes = f32 * TB * Hp                 # intermediate h (compiler scratch)
        if resident_bytes + stream_bytes + scratch_bytes <= vmem_budget:
            break
        TB -= 8
    Bp = _round_up(B, TB)
    nb = Bp // TB

    # Fold eval-mode BatchNorm and the first-layer bias into per-hidden scale/shift:
    #   BN(x@W1.T + b1) = (x@W1.T) * s + t,  s = gamma / sqrt(var+eps),  t = (b1 - mean)*s + beta
    s = gamma / jnp.sqrt(running_var + eps)
    t = (b1 - running_mean) * s + beta

    xp  = jnp.pad(features, ((0, Bp - B), (0, Dp - D)))
    w1p = jnp.pad(w1, ((0, Hp - H), (0, Dp - D)))
    sp  = jnp.pad(s, (0, Hp - H)).reshape(1, Hp)
    tp  = jnp.pad(t, (0, Hp - H)).reshape(1, Hp)
    w2p = jnp.pad(w2, ((0, Dp - D), (0, Hp - H)))
    b2p = jnp.pad(b2, (0, Dp - D)).reshape(1, Dp)

    stream_bytes = 2 * f32 * TB * Dp * 2
    scratch_bytes = f32 * TB * Hp
    vmem_bytes = resident_bytes + stream_bytes + scratch_bytes + (2 << 20)
    vmem_limit = int(min(max(vmem_bytes, 16 << 20), 48 << 20))

    cost = pl.CostEstimate(
        flops=4 * Bp * Dp * Hp + 4 * Bp * Hp + 2 * Bp * Dp,
        transcendentals=0,
        bytes_accessed=f32 * (2 * Bp * Dp + 2 * Hp * Dp + 2 * Hp + 2 * Dp),
    )

    out = pl.pallas_call(
        _adapter_kernel,
        out_shape=jax.ShapeDtypeStruct((Bp, Dp), features.dtype),
        grid_spec=pltpu.PrefetchScalarGridSpec(
            num_scalar_prefetch=0,
            grid=(nb,),
            in_specs=[
                pl.BlockSpec((TB, Dp), lambda i: (i, 0)),   # x : streamed over batch
                pl.BlockSpec((Hp, Dp), lambda i: (0, 0)),   # W1: resident
                pl.BlockSpec((1, Hp), lambda i: (0, 0)),    # s : resident
                pl.BlockSpec((1, Hp), lambda i: (0, 0)),    # t : resident
                pl.BlockSpec((Dp, Hp), lambda i: (0, 0)),   # W2: resident
                pl.BlockSpec((1, Dp), lambda i: (0, 0)),    # b2: resident
            ],
            out_specs=pl.BlockSpec((TB, Dp), lambda i: (i, 0)),
        ),
        compiler_params=pltpu.CompilerParams(
            dimension_semantics=("parallel",),              # batch axis -> both TCs on v7x
            vmem_limit_bytes=vmem_limit,
        ),
        cost_estimate=cost,
    )(xp, w1p, sp, tp, w2p, b2p)

    return out[:B, :D]


if __name__ == "__main__":
    key = jax.random.PRNGKey(0)
    ks = jax.random.split(key, 9)

    B, input_dim, hidden_dim = 8, 32, 16
    eps = 1e-5

    features = jax.random.normal(ks[0], (B, input_dim), dtype=jnp.float32)

    # Deterministic synthetic parameters (mimic nn.Linear init ranges).
    bound1 = 1.0 / (input_dim ** 0.5)
    w1 = jax.random.uniform(ks[1], (hidden_dim, input_dim), minval=-bound1, maxval=bound1,
                            dtype=jnp.float32)
    b1 = jax.random.uniform(ks[2], (hidden_dim,), minval=-bound1, maxval=bound1,
                            dtype=jnp.float32)

    gamma = 1.0 + 0.1 * jax.random.normal(ks[3], (hidden_dim,), dtype=jnp.float32)
    beta = 0.1 * jax.random.normal(ks[4], (hidden_dim,), dtype=jnp.float32)
    running_mean = 0.1 * jax.random.normal(ks[5], (hidden_dim,), dtype=jnp.float32)
    running_var = jax.random.uniform(ks[6], (hidden_dim,), minval=0.5, maxval=1.5,
                                     dtype=jnp.float32)

    bound2 = 1.0 / (hidden_dim ** 0.5)
    w2 = jax.random.uniform(ks[7], (input_dim, hidden_dim), minval=-bound2, maxval=bound2,
                            dtype=jnp.float32)
    b2 = jax.random.uniform(ks[8], (input_dim,), minval=-bound2, maxval=bound2,
                            dtype=jnp.float32)

    out = adapter_forward(features, w1, b1, gamma, beta, running_mean, running_var, w2, b2, eps)
    out = jax.block_until_ready(out)

    # Plain-JAX reference (same math as the PyTorch module in eval mode).
    h_ref = features @ w1.T + b1
    h_ref = (h_ref - running_mean) / jnp.sqrt(running_var + eps) * gamma + beta
    h_ref = jnp.maximum(h_ref, 0.0)
    ref = h_ref @ w2.T + b2

    assert out.shape == (B, input_dim)
    assert jnp.allclose(out, ref, atol=1e-4, rtol=1e-4)

    print("KERNEL_OK")
</pallas_src>

<mosaic_0001>
module attributes {stable_mosaic.version = 11 : i64} {
  func.func @_adapter_kernel(%arg0: i32, %arg1: memref<8x128xf32, #tpu.memory_space<vmem>>, %arg2: memref<128x128xf32, #tpu.memory_space<vmem>>, %arg3: memref<1x128xf32, #tpu.memory_space<vmem>>, %arg4: memref<1x128xf32, #tpu.memory_space<vmem>>, %arg5: memref<128x128xf32, #tpu.memory_space<vmem>>, %arg6: memref<1x128xf32, #tpu.memory_space<vmem>>, %arg7: memref<8x128xf32, #tpu.memory_space<vmem>>) attributes {dimension_semantics = [#tpu.dimension_semantics<parallel>], iteration_bounds = array<i64: 1>, scalar_prefetch = 0 : i64, scratch_operands = 0 : i64, tpu.core_type = #tpu.core_type<tc>, window_params = [{transform_indices = @transform_0, window_bounds = array<i64: 8, 128>}, {pipeline_mode = #tpu.pipeline_mode<synchronous>, transform_indices = @transform_1, window_bounds = array<i64: 128, 128>}, {pipeline_mode = #tpu.pipeline_mode<synchronous>, transform_indices = @transform_2, window_bounds = array<i64: 1, 128>}, {pipeline_mode = #tpu.pipeline_mode<synchronous>, transform_indices = @transform_3, window_bounds = array<i64: 1, 128>}, {pipeline_mode = #tpu.pipeline_mode<synchronous>, transform_indices = @transform_4, window_bounds = array<i64: 128, 128>}, {pipeline_mode = #tpu.pipeline_mode<synchronous>, transform_indices = @transform_5, window_bounds = array<i64: 1, 128>}, {transform_indices = @transform_6, window_bounds = array<i64: 8, 128>}]} {
    %c0 = arith.constant 0 : index
    %c0_0 = arith.constant 0 : index
    %0 = vector.load %arg1[%c0, %c0_0] : memref<8x128xf32, #tpu.memory_space<vmem>>, vector<8x128xf32>
    %c0_1 = arith.constant 0 : index
    %c0_2 = arith.constant 0 : index
    %1 = vector.load %arg2[%c0_1, %c0_2] : memref<128x128xf32, #tpu.memory_space<vmem>>, vector<128x128xf32>
    %cst = arith.constant dense<0.000000e+00> : vector<8x128xf32>
    %2 = tpu.matmul %0, %1, %cst {dimension_numbers = #tpu.dot_dimension_numbers<[1], [1], [0], [0], [0, 0, 1, 0], [], []>} : vector<8x128xf32>, vector<128x128xf32>, vector<8x128xf32> -> vector<8x128xf32>
    %c0_3 = arith.constant 0 : index
    %c0_4 = arith.constant 0 : index
    %3 = vector.load %arg3[%c0_3, %c0_4] : memref<1x128xf32, #tpu.memory_space<vmem>>, vector<1x128xf32>
    %4 = vector.broadcast %3 : vector<1x128xf32> to vector<8x128xf32>
    %5 = arith.mulf %2, %4 : vector<8x128xf32>
    %c0_5 = arith.constant 0 : index
    %c0_6 = arith.constant 0 : index
    %6 = vector.load %arg4[%c0_5, %c0_6] : memref<1x128xf32, #tpu.memory_space<vmem>>, vector<1x128xf32>
    %7 = vector.broadcast %6 : vector<1x128xf32> to vector<8x128xf32>
    %8 = arith.addf %5, %7 : vector<8x128xf32>
    %cst_7 = arith.constant 0.000000e+00 : f32
    %9 = vector.broadcast %cst_7 : f32 to vector<8x128xf32>
    %10 = arith.maximumf %8, %9 : vector<8x128xf32>
    %c0_8 = arith.constant 0 : index
    %c0_9 = arith.constant 0 : index
    %11 = vector.load %arg5[%c0_8, %c0_9] : memref<128x128xf32, #tpu.memory_space<vmem>>, vector<128x128xf32>
    %cst_10 = arith.constant dense<0.000000e+00> : vector<8x128xf32>
    %12 = tpu.matmul %10, %11, %cst_10 {dimension_numbers = #tpu.dot_dimension_numbers<[1], [1], [0], [0], [0, 0, 1, 0], [], []>} : vector<8x128xf32>, vector<128x128xf32>, vector<8x128xf32> -> vector<8x128xf32>
    %c0_11 = arith.constant 0 : index
    %c0_12 = arith.constant 0 : index
    %13 = vector.load %arg6[%c0_11, %c0_12] : memref<1x128xf32, #tpu.memory_space<vmem>>, vector<1x128xf32>
    %14 = vector.broadcast %13 : vector<1x128xf32> to vector<8x128xf32>
    %15 = arith.addf %12, %14 : vector<8x128xf32>
    %c0_13 = arith.constant 0 : index
    %c0_14 = arith.constant 0 : index
    %16 = vector.load %arg7[%c0_13, %c0_14] : memref<8x128xf32, #tpu.memory_space<vmem>>, vector<8x128xf32>
    tpu.vector_store %arg7[%c0_13, %c0_14], %15 {strides = array<i32>} : memref<8x128xf32, #tpu.memory_space<vmem>>, vector<8x128xf32>,
    return
  }
  func.func @transform_0(%arg0: i32) -> (i32, i32) {
    %c0_i32 = arith.constant 0 : i32
    %c0_i32_0 = arith.constant 0 : i32
    return %arg0, %c0_i32 : i32, i32
  }
  func.func @transform_1(%arg0: i32) -> (i32, i32) {
    %c0_i32 = arith.constant 0 : i32
    %c0_i32_0 = arith.constant 0 : i32
    %c0_i32_1 = arith.constant 0 : i32
    return %c0_i32, %c0_i32_0 : i32, i32
  }
  func.func @transform_2(%arg0: i32) -> (i32, i32) {
    %c0_i32 = arith.constant 0 : i32
    %c0_i32_0 = arith.constant 0 : i32
    %c0_i32_1 = arith.constant 0 : i32
    return %c0_i32, %c0_i32_0 : i32, i32
  }
  func.func @transform_3(%arg0: i32) -> (i32, i32) {
    %c0_i32 = arith.constant 0 : i32
    %c0_i32_0 = arith.constant 0 : i32
    %c0_i32_1 = arith.constant 0 : i32
    return %c0_i32, %c0_i32_0 : i32, i32
  }
  func.func @transform_4(%arg0: i32) -> (i32, i32) {
    %c0_i32 = arith.constant 0 : i32
    %c0_i32_0 = arith.constant 0 : i32
    %c0_i32_1 = arith.constant 0 : i32
    return %c0_i32, %c0_i32_0 : i32, i32
  }
  func.func @transform_5(%arg0: i32) -> (i32, i32) {
    %c0_i32 = arith.constant 0 : i32
    %c0_i32_0 = arith.constant 0 : i32
    %c0_i32_1 = arith.constant 0 : i32
    return %c0_i32, %c0_i32_0 : i32, i32
  }
  func.func @transform_6(%arg0: i32) -> (i32, i32) {
    %c0_i32 = arith.constant 0 : i32
    %c0_i32_0 = arith.constant 0 : i32
    return %arg0, %c0_i32 : i32, i32
  }
}

</mosaic_0001>

<llo_original>
// kernel: tpu_custom_call.1
$region0: #{tpu_custom_call.1}
  #allocation0 [shape = 'u32[]', space=smem, size = 0x4, offset = 0x4, fixed_abs, tag = 'smem constant byte address 0x4 - core index']
  #allocation1 [shape = 'u32[72,128]{1,0:T(1,128)}', space=vmem, size = 0x9000, scoped, tag = 'internal scratch']
  %s0 = inlined_call_operand.hbm [shape: f32[8,128], index: 0, kind: input, shape index: {}]
  %s1 = inlined_call_operand.hbm [shape: f32[128,128], index: 1, kind: input, shape index: {}]
  %s2 = inlined_call_operand.vmem [shape: f32[1,128], index: 2, kind: input, shape index: {}]
  %s3 = inlined_call_operand.vmem [shape: f32[1,128], index: 3, kind: input, shape index: {}]
  %s4 = inlined_call_operand.hbm [shape: f32[128,128], index: 4, kind: input, shape index: {}]
  %s5 = inlined_call_operand.vmem [shape: f32[1,128], index: 5, kind: input, shape index: {}]
  %s6 = inlined_call_operand.hbm [shape: f32[8,128], index: 6, kind: output, shape index: {}]
  %s7 = sld [smem:[#allocation0]]
  $region46: #{tpu_custom_call.1} parent=0
    _
  %s9 = ssub.s32 1, %s7
  %s10 = scalar_select 0, %s9, %s7
  $region1: #{tpu_custom_call.1} parent=0
    #allocation2 [shape = 'u8[4096]{0}', space=vmem, size = 0x1000, scoped, tag = 'input window, operand 0, single buffered']
    #allocation3 [shape = 's32[1]{0}', space=sflag, size = 0x4, scoped, tag = 'scoped memory for tpu_custom_call.1']
    #allocation4 [shape = 's32[1]{0}', space=sflag, size = 0x4, scoped, tag = 'scoped memory for tpu_custom_call.1']
    #allocation5 [shape = 'u8[65536]{0}', space=vmem, size = 0x10000, scoped, tag = 'input window, operand 1, single buffered']
    #allocation6 [shape = 's32[1]{0}', space=sflag, size = 0x4, scoped, tag = 'scoped memory for tpu_custom_call.1']
    #allocation7 [shape = 'u8[65536]{0}', space=vmem, size = 0x10000, scoped, tag = 'input window, operand 4, single buffered']
    #allocation8 [shape = 'u8[4096]{0}', space=vmem, size = 0x1000, scoped, tag = 'output window, operand 0, single buffered']
    %11 = vsyncpa [#allocation3], 0
    %12 = vsyncpa [#allocation6], 0
    %13 = vsyncpa [#allocation4], 0
    // Predicated region
    $region2: #{tpu_custom_call.1} parent=1 // pred_check
      _
    $region3: #{tpu_custom_call.1} parent=1 // pred_check_branch
      %15 = sbr.rel (0) target = $region5
    $region4: #{tpu_custom_call.1} parent=1 // pred_region
      %17 = vsyncadd [#allocation3], 0
      %s19 = sshll.u32 %s0, 4
      %s20 = int_to_ptr.hbm [resolvable:$true] %s19
      %s21 = sshll.u32 [#allocation2], 4
      %s22 = int_to_ptr.vmem [resolvable:$true] %s21
      %24 = dma.hbm_to_vmem [thread:$0]  %s20, 128, %s22, [#allocation3]
    $region5: #{tpu_custom_call.1} parent=1 // pred_fallthru
      _
    // Predicated region
    $region6: #{tpu_custom_call.1} parent=1 // pred_check
      _
    $region7: #{tpu_custom_call.1} parent=1 // pred_check_branch
      %26 = sbr.rel (0) target = $region9
    $region8: #{tpu_custom_call.1} parent=1 // pred_region
      %28 = vsyncadd [#allocation6], 0
      %s29 = sshll.u32 %s1, 4
      %s30 = int_to_ptr.hbm [resolvable:$true] %s29
      %s31 = sshll.u32 [#allocation5], 4
      %s32 = int_to_ptr.vmem [resolvable:$true] %s31
      %37 = dma.hbm_to_vmem [thread:$0]  %s30, 2048, %s32, [#allocation6], 128, 128, 8
    $region9: #{tpu_custom_call.1} parent=1 // pred_fallthru
      _
    // Predicated region
    $region10: #{tpu_custom_call.1} parent=1 // pred_check
      _
    $region11: #{tpu_custom_call.1} parent=1 // pred_check_branch
      %39 = sbr.rel (0) target = $region13
    $region12: #{tpu_custom_call.1} parent=1 // pred_region
      _
    $region13: #{tpu_custom_call.1} parent=1 // pred_fallthru
      _
    // Predicated region
    $region14: #{tpu_custom_call.1} parent=1 // pred_check
      _
    $region15: #{tpu_custom_call.1} parent=1 // pred_check_branch
      %41 = sbr.rel (0) target = $region17
    $region16: #{tpu_custom_call.1} parent=1 // pred_region
      _
    $region17: #{tpu_custom_call.1} parent=1 // pred_fallthru
      _
    // Predicated region
    $region18: #{tpu_custom_call.1} parent=1 // pred_check
      _
    $region19: #{tpu_custom_call.1} parent=1 // pred_check_branch
      %43 = sbr.rel (0) target = $region21
    $region20: #{tpu_custom_call.1} parent=1 // pred_region
      %45 = vsyncadd [#allocation6], 0
      %s46 = sshll.u32 %s4, 4
      %s47 = int_to_ptr.hbm [resolvable:$true] %s46
      %s48 = sshll.u32 [#allocation7], 4
      %s49 = int_to_ptr.vmem [resolvable:$true] %s48
      %54 = dma.hbm_to_vmem [thread:$0]  %s47, 2048, %s49, [#allocation6], 128, 128, 8
    $region21: #{tpu_custom_call.1} parent=1 // pred_fallthru
      _
    // Predicated region
    $region22: #{tpu_custom_call.1} parent=1 // pred_check
      _
    $region23: #{tpu_custom_call.1} parent=1 // pred_check_branch
      %56 = sbr.rel (0) target = $region25
    $region24: #{tpu_custom_call.1} parent=1 // pred_region
      _
    $region25: #{tpu_custom_call.1} parent=1 // pred_fallthru
      _
    // Predicated region
    $region26: #{tpu_custom_call.1} parent=1 // pred_check
      _
    $region27: #{tpu_custom_call.1} parent=1 // pred_check_branch
      %58 = sbr.rel (0) target = $region29
    $region28: #{tpu_custom_call.1} parent=1 // pred_region
      %60 = dma.done [#allocation3], 128
    $region29: #{tpu_custom_call.1} parent=1 // pred_fallthru
      _
    // Predicated region
    $region30: #{tpu_custom_call.1} parent=1 // pred_check
      _
    $region31: #{tpu_custom_call.1} parent=1 // pred_check_branch
      %62 = sbr.rel (0) target = $region33
    $region32: #{tpu_custom_call.1} parent=1 // pred_region
      %64 = dma.done [#allocation6], 2048
    $region33: #{tpu_custom_call.1} parent=1 // pred_fallthru
      _
    // Predicated region
    $region34: #{tpu_custom_call.1} parent=1 // pred_check
      _
    $region35: #{tpu_custom_call.1} parent=1 // pred_check_branch
      %66 = sbr.rel (0) target = $region37
    $region36: #{tpu_custom_call.1} parent=1 // pred_region
      %68 = dma.done [#allocation6], 2048
    $region37: #{tpu_custom_call.1} parent=1 // pred_fallthru
      _
    %v69 = vld [vmem:[#allocation2] sm:$0xff]
    %v70 = vld [vmem:[#allocation5] sm:$0xff]
    %v71 = vld [vmem:[#allocation5 + $0x8] sm:$0xff]
    %v72 = vld [vmem:[#allocation5 + $0x10] sm:$0xff]
    %v73 = vld [vmem:[#allocation5 + $0x18] sm:$0xff]
    %v74 = vld [vmem:[#allocation5 + $0x20] sm:$0xff]
    %v75 = vld [vmem:[#allocation5 + $0x28] sm:$0xff]
    %v76 = vld [vmem:[#allocation5 + $0x30] sm:$0xff]
    %v77 = vld [vmem:[#allocation5 + $0x38] sm:$0xff]
    %v78 = vld [vmem:[#allocation5 + $0x40] sm:$0xff]
    %v79 = vld [vmem:[#allocation5 + $0x48] sm:$0xff]
    %v80 = vld [vmem:[#allocation5 + $0x50] sm:$0xff]
    %v81 = vld [vmem:[#allocation5 + $0x58] sm:$0xff]
    %v82 = vld [vmem:[#allocation5 + $0x60] sm:$0xff]
    %v83 = vld [vmem:[#allocation5 + $0x68] sm:$0xff]
    %v84 = vld [vmem:[#allocation5 + $0x70] sm:$0xff]
    %v85 = vld [vmem:[#allocation5 + $0x78] sm:$0xff]
    %86 = vmatpush.xpose.msra.mxu0 %v85
    %87 = vmatpush.xpose.msra.mxu0 %v84
    %88 = vmatpush.xpose.msra.mxu0 %v83
    %89 = vmatpush.xpose.msra.mxu0 %v82
    %90 = vmatpush.xpose.msra.mxu0 %v81
    %91 = vmatpush.xpose.msra.mxu0 %v80
    %92 = vmatpush.xpose.msra.mxu0 %v79
    %93 = vmatpush.xpose.msra.mxu0 %v78
    %94 = vmatpush.xpose.msra.mxu0 %v77
    %95 = vmatpush.xpose.msra.mxu0 %v76
    %96 = vmatpush.xpose.msra.mxu0 %v75
    %97 = vmatpush.xpose.msra.mxu0 %v74
    %98 = vmatpush.xpose.msra.mxu0 %v73
    %99 = vmatpush.xpose.msra.mxu0 %v72
    %100 = vmatpush.xpose.msra.mxu0 %v71
    %101 = vmatpush.xpose.msra.mxu0 %v70
    %102 = vmatmul.f32.gmra.mxu0 %v69
    %v103 = vpop.f32.mrf.mxu0
    %v104 = vadd.f32 0.0, %v103
    %105 = vdwg.mxu0
    %v106 = vld [vmem:[%s2] sm:$0x1]
    %v108 = vperm.slane %v106, 0
    %v110 = vmul.f32 %v104, %v108
    %v111 = vld [vmem:[%s3] sm:$0x1]
    %v113 = vperm.slane %v111, 0
    %v115 = vadd.f32 %v110, %v113
    %v116 = vmax.f32 %v115, 0.0
    %v117 = vld [vmem:[#allocation7] sm:$0xff]
    %v118 = vld [vmem:[#allocation7 + $0x8] sm:$0xff]
    %v119 = vld [vmem:[#allocation7 + $0x10] sm:$0xff]
    %v120 = vld [vmem:[#allocation7 + $0x18] sm:$0xff]
    %v121 = vld [vmem:[#allocation7 + $0x20] sm:$0xff]
    %v122 = vld [vmem:[#allocation7 + $0x28] sm:$0xff]
    %v123 = vld [vmem:[#allocation7 + $0x30] sm:$0xff]
    %v124 = vld [vmem:[#allocation7 + $0x38] sm:$0xff]
    %v125 = vld [vmem:[#allocation7 + $0x40] sm:$0xff]
    %v126 = vld [vmem:[#allocation7 + $0x48] sm:$0xff]
    %v127 = vld [vmem:[#allocation7 + $0x50] sm:$0xff]
    %v128 = vld [vmem:[#allocation7 + $0x58] sm:$0xff]
    %v129 = vld [vmem:[#allocation7 + $0x60] sm:$0xff]
    %v130 = vld [vmem:[#allocation7 + $0x68] sm:$0xff]
    %v131 = vld [vmem:[#allocation7 + $0x70] sm:$0xff]
    %v132 = vld [vmem:[#allocation7 + $0x78] sm:$0xff]
    %v133 = vld [vmem:[%s5] sm:$0x1]
    %v135 = vperm.slane %v133, 0
    %137 = vmatpush.xpose.msra.mxu0 %v132
    %138 = vmatpush.xpose.msra.mxu0 %v131
    %139 = vmatpush.xpose.msra.mxu0 %v130
    %140 = vmatpush.xpose.msra.mxu0 %v129
    %141 = vmatpush.xpose.msra.mxu0 %v128
    %142 = vmatpush.xpose.msra.mxu0 %v127
    %143 = vmatpush.xpose.msra.mxu0 %v126
    %144 = vmatpush.xpose.msra.mxu0 %v125
    %145 = vmatpush.xpose.msra.mxu0 %v124
    %146 = vmatpush.xpose.msra.mxu0 %v123
    %147 = vmatpush.xpose.msra.mxu0 %v122
    %148 = vmatpush.xpose.msra.mxu0 %v121
    %149 = vmatpush.xpose.msra.mxu0 %v120
    %150 = vmatpush.xpose.msra.mxu0 %v119
    %151 = vmatpush.xpose.msra.mxu0 %v118
    %152 = vmatpush.xpose.msra.mxu0 %v117
    %153 = vmatmul.f32.gmra.mxu0 %v116
    %v154 = vpop.f32.mrf.mxu0
    %v155 = vadd.f32 %v135, %v154
    %156 = vdwg.mxu0
    %157 = vst [vmem:[#allocation8] sm:$0xff] %v155
    // Predicated region
    $region38: #{tpu_custom_call.1} parent=1 // pred_check
      _
    $region39: #{tpu_custom_call.1} parent=1 // pred_check_branch
      %159 = sbr.rel (0) target = $region41
    $region40: #{tpu_custom_call.1} parent=1 // pred_region
      %161 = vsyncadd [#allocation4], 0
      %s163 = sshll.u32 [#allocation8], 4
      %s164 = int_to_ptr.vmem [resolvable:$true] %s163
      %s165 = sshll.u32 %s6, 4
      %s166 = int_to_ptr.hbm [resolvable:$true] %s165
      %168 = dma.vmem_to_hbm [thread:$0]  %s164, 128, %s166, [#allocation4]
    $region41: #{tpu_custom_call.1} parent=1 // pred_fallthru
      _
    // Predicated region
    $region42: #{tpu_custom_call.1} parent=1 // pred_check
      _
    $region43: #{tpu_custom_call.1} parent=1 // pred_check_branch
      %170 = sbr.rel (0) target = $region45
    $region44: #{tpu_custom_call.1} parent=1 // pred_region
      %172 = dma.done [#allocation4], 128
    $region45: #{tpu_custom_call.1} parent=1 // pred_fallthru
      _
    %173 = vsyncpa [#allocation3], 1
    %174 = vsyncpa [#allocation6], 1
    %175 = vsyncpa [#allocation4], 1

</llo_original>
